<compile_context>
chip_gen: v6e
topology: v6e:2x2x1
jax: 0.10.0
libtpu: 0.0.40
codegen_flags: <defaults>
</compile_context>

<pallas_src>
import math

import jax
import jax.numpy as jnp
from jax.experimental import pallas as pl
from jax.experimental.pallas import tpu as pltpu


_TINY_BYTES = 256 * 1024          # below this, plain XLA copy beats a kernel launch
_TILE_TARGET_BYTES = 3 << 20      # 4 live buffers ≈ 12 MiB: safe on v5e/v6e/v7x defaults


def _copy_kernel(x_ref, o_ref):
    # Whole-tile passthrough; lane-dense tiles -> unmasked vld/vst at full
    # lane occupancy. Purely HBM-bandwidth bound.
    o_ref[...] = x_ref[...]


def _sublane_quantum(dtype):
    """Native sublane packing: 8 rows for 32-bit, 16 for 16-bit, 32 for 8-bit."""
    itemsize = jnp.dtype(dtype).itemsize
    return {4: 8, 2: 16, 1: 32}.get(itemsize, 8)


def _choose_2d_shape(total_padded, quantum):
    """Pick a lane-dense (rows, cols): cols a multiple of 128, rows >= quantum
    when possible. total_padded is guaranteed to be a multiple of 128."""
    for cols in (2048, 1024, 512, 256, 128):
        if total_padded % cols == 0 and total_padded // cols >= quantum:
            return total_padded // cols, cols
    return total_padded // 128, 128


def _choose_tile_rows(rows, cols, itemsize, quantum,
                      target_bytes=_TILE_TARGET_BYTES):
    """Cap-based tile picker (no divisor search): largest quantum-aligned row
    count whose tile stays under target_bytes, clamped so the grid has at
    least 2 steps for non-trivial row counts (v7x megacore sharding). The last
    block may be ragged; pl.cdiv handles it."""
    cap_rows = (target_bytes // (cols * itemsize)) // quantum * quantum
    cap_rows = max(quantum, cap_rows)
    if rows > quantum:
        # Ensure >= 2 grid steps: tile at most ceil(rows/2), rounded up to quantum.
        half = -(-rows // 2)
        half_q = -(-half // quantum) * quantum
        cap_rows = min(cap_rows, half_q)
    tile_rows = min(rows, cap_rows)
    if tile_rows >= quantum:
        tile_rows = (tile_rows // quantum) * quantum
    else:
        tile_rows = rows  # full extent (only reachable for tiny row counts)
    return tile_rows


def _pallas_identity_copy_2d(x2d, tile_rows):
    rows, cols = x2d.shape
    grid = (pl.cdiv(rows, tile_rows),)
    return pl.pallas_call(
        _copy_kernel,
        out_shape=jax.ShapeDtypeStruct((rows, cols), x2d.dtype),
        grid_spec=pltpu.PrefetchScalarGridSpec(
            num_scalar_prefetch=0,
            grid=grid,
            in_specs=[pl.BlockSpec((tile_rows, cols), lambda i: (i, 0))],
            out_specs=pl.BlockSpec((tile_rows, cols), lambda i: (i, 0)),
        ),
        compiler_params=pltpu.CompilerParams(
            # Parallel row axis: shards across both TensorCores on v7x when
            # the grid has >= 2 steps; harmless on v5e/v6e.
            dimension_semantics=("parallel",),
        ),
    )(x2d)


def _materialize_copy(x, min_kernel_bytes=_TINY_BYTES):
    """Return a fresh buffer with the same contents as x."""
    shape = x.shape
    dtype = x.dtype
    itemsize = jnp.dtype(dtype).itemsize
    total = math.prod(shape) if shape else 1
    total_bytes = total * itemsize

    # Tiny inputs: Pallas launch + pipeline overhead dominates; let XLA copy.
    if total == 0 or total_bytes <= min_kernel_bytes:
        return jnp.copy(x)

    quantum = _sublane_quantum(dtype)

    # Lane-dense flattening; pad to a multiple of 128 if needed so every shape
    # gets a real materialized copy (pad is sliced off afterwards).
    flat = x.reshape(-1)
    pad = (-total) % 128
    if pad:
        flat = jnp.pad(flat, (0, pad))
    padded_total = total + pad

    rows, cols = _choose_2d_shape(padded_total, quantum)
    tile_rows = _choose_tile_rows(rows, cols, itemsize, quantum)

    out2d = _pallas_identity_copy_2d(flat.reshape(rows, cols), tile_rows)
    out_flat = out2d.reshape(-1)
    if pad:
        out_flat = out_flat[:total]
    return out_flat.reshape(shape)


class UNetUp:
    """Pallas port of the placeholder UNetUp. The PyTorch __init__ registers
    no layers, so there are no parameters; forward(x, skip_input) -> x."""

    def __init__(self, in_channels, out_channels, dropout=0.0):
        self.in_channels = in_channels
        self.out_channels = out_channels
        self.dropout = dropout

    def __call__(self, x, skip_input=None, materialize=False):
        # Fast path (default): identity needs no kernel — return x unchanged.
        # skip_input is intentionally unused (matches the reference forward).
        if not materialize:
            return x
        # Materialized-copy path: fresh buffer with identical contents.
        return _materialize_copy(x)


if __name__ == "__main__":
    key = jax.random.PRNGKey(0)
    k1, k2 = jax.random.split(key)

    # Small shapes consistent with a UNet up-block call site.
    x = jax.random.normal(k1, (2, 4, 16, 16), dtype=jnp.float32)
    skip = jax.random.normal(k2, (2, 4, 16, 16), dtype=jnp.float32)

    block = UNetUp(in_channels=4, out_channels=4, dropout=0.0)

    # Default (recommended) path: pure identity, no kernel, no HBM traffic.
    out_fast = jax.block_until_ready(block(x, skip))
    assert out_fast.shape == x.shape and out_fast.dtype == x.dtype
    assert bool(jnp.array_equal(out_fast, x))

    # Materialized-copy path: this input is tiny, so it routes to an XLA copy.
    out_copy = jax.block_until_ready(block(x, skip, materialize=True))
    assert out_copy.shape == x.shape and out_copy.dtype == x.dtype
    assert bool(jnp.array_equal(out_copy, x))

    # Exercise the Pallas identity-copy kernel once on TPU (force the kernel
    # path by disabling the tiny-input bypass): 2048 elems -> lane-dense
    # (8, 256) tiles, fully unmasked (8,128)-aligned loads/stores.
    out_kernel = jax.block_until_ready(_materialize_copy(x, min_kernel_bytes=0))
    assert out_kernel.shape == x.shape and out_kernel.dtype == x.dtype
    assert bool(jnp.array_equal(out_kernel, x))

    print("KERNEL_OK")
</pallas_src>

<mosaic_0001>
module attributes {stable_mosaic.version = 11 : i64} {
  func.func @_copy_kernel(%arg0: i32, %arg1: memref<8x256xf32, #tpu.memory_space<vmem>>, %arg2: memref<8x256xf32, #tpu.memory_space<vmem>>) attributes {dimension_semantics = [#tpu.dimension_semantics<parallel>], iteration_bounds = array<i64: 1>, scalar_prefetch = 0 : i64, scratch_operands = 0 : i64, tpu.core_type = #tpu.core_type<tc>, window_params = [{transform_indices = @transform_0, window_bounds = array<i64: 8, 256>}, {transform_indices = @transform_1, window_bounds = array<i64: 8, 256>}]} {
    %c0 = arith.constant 0 : index
    %c0_0 = arith.constant 0 : index
    %0 = vector.load %arg1[%c0, %c0_0] : memref<8x256xf32, #tpu.memory_space<vmem>>, vector<8x256xf32>
    %c0_1 = arith.constant 0 : index
    %c0_2 = arith.constant 0 : index
    %1 = vector.load %arg2[%c0_1, %c0_2] : memref<8x256xf32, #tpu.memory_space<vmem>>, vector<8x256xf32>
    tpu.vector_store %arg2[%c0_1, %c0_2], %0 {strides = array<i32>} : memref<8x256xf32, #tpu.memory_space<vmem>>, vector<8x256xf32>,
    return
  }
  func.func @transform_0(%arg0: i32) -> (i32, i32) {
    %c0_i32 = arith.constant 0 : i32
    %c0_i32_0 = arith.constant 0 : i32
    return %arg0, %c0_i32 : i32, i32
  }
  func.func @transform_1(%arg0: i32) -> (i32, i32) {
    %c0_i32 = arith.constant 0 : i32
    %c0_i32_0 = arith.constant 0 : i32
    return %arg0, %c0_i32 : i32, i32
  }
}

</mosaic_0001>

<llo_original>
// kernel: tpu_custom_call.1
$region0: #{tpu_custom_call.1}
  #allocation0 [shape = 'u32[]', space=smem, size = 0x4, offset = 0x4, fixed_abs, tag = 'smem constant byte address 0x4 - core index']
  #allocation1 [shape = 'u32[144,128]{1,0:T(1,128)}', space=vmem, size = 0x12000, scoped, tag = 'internal scratch']
  %s0 = inlined_call_operand.hbm [shape: f32[8,256], index: 0, kind: input, shape index: {}]
  %s1 = inlined_call_operand.hbm [shape: f32[8,256], index: 1, kind: output, shape index: {}]
  %s2 = sld [smem:[#allocation0]]
  $region18: #{tpu_custom_call.1} parent=0
    _
  %s4 = ssub.s32 1, %s2
  %s5 = scalar_select 0, %s4, %s2
  $region1: #{tpu_custom_call.1} parent=0
    #allocation2 [shape = 'u8[8192]{0}', space=vmem, size = 0x2000, scoped, tag = 'input window, operand 0, single buffered']
    #allocation3 [shape = 's32[1]{0}', space=sflag, size = 0x4, scoped, tag = 'scoped memory for tpu_custom_call.1']
    #allocation4 [shape = 's32[1]{0}', space=sflag, size = 0x4, scoped, tag = 'scoped memory for tpu_custom_call.1']
    #allocation5 [shape = 'u8[8192]{0}', space=vmem, size = 0x2000, scoped, tag = 'output window, operand 0, single buffered']
    %6 = vsyncpa [#allocation3], 0
    %7 = vsyncpa [#allocation4], 0
    // Predicated region
    $region2: #{tpu_custom_call.1} parent=1 // pred_check
      _
    $region3: #{tpu_custom_call.1} parent=1 // pred_check_branch
      %9 = sbr.rel (0) target = $region5
    $region4: #{tpu_custom_call.1} parent=1 // pred_region
      %s11 = ssub.s32 256, 256
      %12 = vsyncadd [#allocation3], %s11
      %s14 = sshll.u32 [#allocation2], 4
      %s15 = int_to_ptr.vmem [resolvable:$true] %s14
      %17 = dma.hbm_to_vmem [thread:$0]  %s0, 256, %s15, [#allocation3]
    $region5: #{tpu_custom_call.1} parent=1 // pred_fallthru
      _
    // Predicated region
    $region6: #{tpu_custom_call.1} parent=1 // pred_check
      _
    $region7: #{tpu_custom_call.1} parent=1 // pred_check_branch
      %19 = sbr.rel (0) target = $region9
    $region8: #{tpu_custom_call.1} parent=1 // pred_region
      %20 = dma.done [#allocation3], 256
    $region9: #{tpu_custom_call.1} parent=1 // pred_fallthru
      _
    %v21 = vld [vmem:[#allocation2] sm:$0xff]
    %v22 = vld [vmem:[#allocation2 + $0x8] sm:$0xff]
    %23 = vst [vmem:[#allocation5] sm:$0xff] %v21
    %24 = vst [vmem:[#allocation5 + $0x8] sm:$0xff] %v22
    // Predicated region
    $region10: #{tpu_custom_call.1} parent=1 // pred_check
      _
    $region11: #{tpu_custom_call.1} parent=1 // pred_check_branch
      %26 = sbr.rel (0) target = $region13
    $region12: #{tpu_custom_call.1} parent=1 // pred_region
      %s28 = ssub.s32 256, 256
      %29 = vsyncadd [#allocation4], %s28
      %s31 = sshll.u32 [#allocation5], 4
      %s32 = int_to_ptr.vmem [resolvable:$true] %s31
      %34 = dma.vmem_to_hbm [thread:$0]  %s32, 256, %s1, [#allocation4]
    $region13: #{tpu_custom_call.1} parent=1 // pred_fallthru
      _
    // Predicated region
    $region14: #{tpu_custom_call.1} parent=1 // pred_check
      _
    $region15: #{tpu_custom_call.1} parent=1 // pred_check_branch
      %36 = sbr.rel (0) target = $region17
    $region16: #{tpu_custom_call.1} parent=1 // pred_region
      %37 = dma.done [#allocation4], 256
    $region17: #{tpu_custom_call.1} parent=1 // pred_fallthru
      _
    %38 = vsyncpa [#allocation3], 1
    %39 = vsyncpa [#allocation4], 1

</llo_original>
